<compile_context>
chip_gen: v7x
topology: tpu7x:2x2x1
jax: 0.10.0
libtpu: 0.0.40
codegen_flags: <defaults>
</compile_context>

<pallas_src>
import jax
import jax.numpy as jnp
import numpy as np
from jax.experimental import pallas as pl
from jax.experimental.pallas import tpu as pltpu

C_OUT = 4      # A3TGCN out_channels
LIN_OUT = 12   # torch.nn.Linear(4, 12)
_HP = jax.lax.Precision.HIGHEST
_MIB = 1024 * 1024


# ----------------------------------------------------------------------------- kernel
def _net_kernel(a_ref, xr_ref, gate_ref, lin_ref, out_ref, acc_ref):
    # a_ref   : [TR, TK]       (row, col) block of the GCN-normalized adjacency (bf16 or f32)
    # xr_ref  : [TK, PK]       X repeated 4x along the lane axis (PK = periods*4)
    # gate_ref: [4, PK]        rows: w_eff_z, b_eff_z, w_eff_h, b_eff_h (period-tiled), f32
    # lin_ref : [PK+1, F]      rows 0..PK-1: probs[t]*W_lin[c,:F] ; row PK: bias  (F = min(f, 12))
    # out_ref : [TR, F]
    # acc_ref : [TR, PK] f32   K-accumulator for A_hat @ X_rep
    k = pl.program_id(1)

    @pl.when(k == 0)
    def _():
        acc_ref[...] = jnp.zeros_like(acc_ref)

    acc_ref[...] += jnp.dot(a_ref[...], xr_ref[...], preferred_element_type=jnp.float32)

    @pl.when(k == pl.num_programs(1) - 1)
    def _():
        AXr = acc_ref[...]                    # [TR, PK]
        wz = gate_ref[0:1, :]                 # hoisted once; broadcast over the row block
        bz = gate_ref[1:2, :]
        wh = gate_ref[2:3, :]
        bh = gate_ref[3:4, :]

        Z = jax.nn.sigmoid(AXr * wz + bz)     # [TR, PK]  pure VPU/EUP, all periods at once
        Ht = jnp.tanh(AXr * wh + bh)          # [TR, PK]
        G = (1.0 - Z) * Ht                    # [TR, PK]  (H0 == 0  =>  H_t = (1-Z)*H~)

        PK = G.shape[1]
        out_ref[...] = (jnp.dot(G, lin_ref[0:PK, :], preferred_element_type=jnp.float32)
                        + lin_ref[PK:PK + 1, :])


# ----------------------------------------------------------------------------- glue
def gcn_norm_adj(edge_index, num_nodes):
    """Dense GCN-normalized adjacency  A_hat = D^-1/2 (A + I) D^-1/2  (edge weight 1).

    One-time preprocessing: build once per graph and reuse across forward calls.
    """
    src = edge_index[0]
    dst = edge_index[1]
    A = jnp.zeros((num_nodes, num_nodes), jnp.float32).at[dst, src].add(1.0)
    A = A + jnp.eye(num_nodes, dtype=jnp.float32)                   # add_self_loops=True
    deg = jnp.sum(A, axis=1)
    dinv = jnp.where(deg > 0, jax.lax.rsqrt(deg), 0.0)
    return dinv[:, None] * A * dinv[None, :]


def _round_up(n, m):
    return ((n + m - 1) // m) * m


def _gen_tiling():
    """Generation-aware (max_row_tile, max_col_tile, vmem_limit_bytes)."""
    try:
        vmem_cap = int(pltpu.get_tpu_info().vmem_capacity_bytes)
    except Exception:
        vmem_cap = 64 * _MIB                       # conservative fallback (v7x-sized VMEM)
    if vmem_cap >= 96 * _MIB:                      # v5e / v6e: 128 MiB physical VMEM
        return 1024, 1024, 96 * _MIB
    return 256, 512, 48 * _MIB                     # v7x: 64 MiB physical VMEM


def _fold_params(params, periods, f_eff):
    """Exploit H0 == 0: drop the R gate / concats, fold GCN weights + attention softmax + the
    [:, :f] output slice into two small packed parameter arrays (plain JAX, once per forward)."""
    wlz_top = params["w_lin_z"][:C_OUT]                              # [4, 4]  (conv part of concat)
    wlh_top = params["w_lin_h"][:C_OUT]                              # [4, 4]
    w_eff_z = jnp.dot(params["w_gcn_z"], wlz_top, precision=_HP)     # [1, 4]
    b_eff_z = jnp.dot(params["b_gcn_z"], wlz_top, precision=_HP) + params["b_lin_z"]
    w_eff_h = jnp.dot(params["w_gcn_h"], wlh_top, precision=_HP)
    b_eff_h = jnp.dot(params["b_gcn_h"], wlh_top, precision=_HP) + params["b_lin_h"]

    tile_p = lambda v: jnp.tile(v, (1, periods))                     # [1, 4] -> [1, P*4]
    gates = jnp.concatenate(
        [tile_p(w_eff_z), tile_p(b_eff_z), tile_p(w_eff_h), tile_p(b_eff_h)], axis=0
    ).astype(jnp.float32)                                            # [4, PK]

    probs = jax.nn.softmax(params["attention"], axis=-1)[0]          # [P]
    w_lin_f = params["w_linear"][:, :f_eff]                          # [4, f]  (slice folded in)
    # W_big[t*4+c, :] = probs[t] * W_lin[c, :f]  -> attention + slice folded into final Linear.
    w_big = jnp.reshape(probs[:, None, None] * w_lin_f[None, :, :],
                        (periods * C_OUT, f_eff))
    lin = jnp.concatenate([w_big, params["b_linear"][:, :f_eff]], axis=0).astype(jnp.float32)
    return gates, lin                                                # [4, PK], [PK+1, f]


def net_forward(x, a_hat, params, f, *, tile_rows=None, tile_cols=None,
                matmul_dtype=jnp.bfloat16):
    """x: [N, 1, P] float32 (PyTorch A3TGCN input layout), a_hat: precomputed [N, N] A_hat.

    Default matmul_dtype is bf16: the kernel is HBM-bound on streaming A_hat, and accumulation
    stays in f32 on the MXU. Pass jnp.float32 for a bit-tighter numerics.
    """
    N, cin, P = x.shape
    assert cin == 1
    PK = P * C_OUT
    f_eff = min(int(f), LIN_OUT)

    max_tr, max_tk, vmem_limit = _gen_tiling()
    if tile_rows is not None:
        max_tr = tile_rows
    if tile_cols is not None:
        max_tk = tile_cols

    # --- row tiling (parallel grid axis). Balanced blocks (no near-empty padded tail), and >=2
    # blocks whenever N allows so both v7x TensorCores get work (harmless on 1-TC v5e/v6e). ---
    n8 = _round_up(N, 8)
    min_row_blocks = 2 if n8 >= 16 else 1
    nrb = max(min_row_blocks, -(-n8 // max_tr))
    TR = _round_up(-(-n8 // nrb), 8)
    n_pad_r = nrb * TR

    # --- column (contraction) tiling: bounds VMEM independent of N. Single block if it fits
    # (any size, equals full dim); otherwise 128-aligned balanced K tiles. ---
    if n8 <= max_tk:
        TK = n8
        n_pad_c = n8
        nkb = 1
    else:
        n128 = _round_up(N, 128)
        nkb = -(-n128 // max_tk)
        TK = _round_up(-(-n128 // nkb), 128)
        n_pad_c = nkb * TK

    x2 = x[:, 0, :].astype(jnp.float32)                              # [N, P]
    x_rep = jnp.repeat(x2, C_OUT, axis=1)                            # [N, PK] shared GCN RHS
    if n_pad_c != N:
        x_rep = jnp.pad(x_rep, ((0, n_pad_c - N), (0, 0)))
    x_rep = x_rep.astype(matmul_dtype)

    a_p = a_hat
    if (n_pad_r, n_pad_c) != a_hat.shape:
        a_p = jnp.pad(a_hat, ((0, n_pad_r - N), (0, n_pad_c - N)))
    a_p = a_p.astype(matmul_dtype)                                   # bf16 by default: 2x A bytes

    gates, lin = _fold_params(params, P, f_eff)

    out_full = pl.pallas_call(
        _net_kernel,
        out_shape=jax.ShapeDtypeStruct((n_pad_r, f_eff), jnp.float32),
        grid=(nrb, nkb),                                             # (row blocks, K blocks)
        in_specs=[
            pl.BlockSpec((TR, TK), lambda i, k: (i, k)),             # A_hat block (streamed)
            pl.BlockSpec((TK, PK), lambda i, k: (k, 0)),             # X_rep K-slab
            pl.BlockSpec((4, PK), lambda i, k: (0, 0)),              # packed gate params (resident)
            pl.BlockSpec((PK + 1, f_eff), lambda i, k: (0, 0)),      # packed linear (+attn, +slice)
        ],
        out_specs=pl.BlockSpec((TR, f_eff), lambda i, k: (i, 0)),    # written only on last K step
        scratch_shapes=[pltpu.VMEM((TR, PK), jnp.float32)],          # f32 K-accumulator
        compiler_params=pltpu.CompilerParams(
            dimension_semantics=("parallel", "arbitrary"),
            vmem_limit_bytes=vmem_limit,
        ),
    )(a_p, x_rep, gates, lin)

    return out_full[:N]                                              # drop padded rows only


# ----------------------------------------------------------------------------- reference
def reference_forward(x, edge_index, params, f):
    """Unfolded A3TGCN + Linear reference (full concat/R-gate form, HIGHEST precision)."""
    N, _, P = x.shape
    X = x[:, 0, :]
    A = gcn_norm_adj(edge_index, N)
    AX = jnp.dot(A, X, precision=_HP)
    probs = jax.nn.softmax(params["attention"], axis=-1)             # [1, P]
    H0 = jnp.zeros((N, C_OUT), jnp.float32)
    H_acc = jnp.zeros((N, C_OUT), jnp.float32)
    for t in range(P):
        ax_t = AX[:, t:t + 1]
        gz = jnp.dot(ax_t, params["w_gcn_z"], precision=_HP) + params["b_gcn_z"]
        gr = jnp.dot(ax_t, params["w_gcn_r"], precision=_HP) + params["b_gcn_r"]
        gh = jnp.dot(ax_t, params["w_gcn_h"], precision=_HP) + params["b_gcn_h"]
        Z = jax.nn.sigmoid(jnp.dot(jnp.concatenate([gz, H0], 1), params["w_lin_z"], precision=_HP)
                           + params["b_lin_z"])
        R = jax.nn.sigmoid(jnp.dot(jnp.concatenate([gr, H0], 1), params["w_lin_r"], precision=_HP)
                           + params["b_lin_r"])
        H_tilde = jnp.tanh(jnp.dot(jnp.concatenate([gh, H0 * R], 1), params["w_lin_h"], precision=_HP)
                           + params["b_lin_h"])
        H_t = Z * H0 + (1.0 - Z) * H_tilde
        H_acc = H_acc + probs[:, t:t + 1] * H_t
    out = jnp.dot(H_acc, params["w_linear"], precision=_HP) + params["b_linear"]
    return out[:, :f]


# ----------------------------------------------------------------------------- params
def init_params(key, periods):
    """Deterministic synthetic init (shapes match the torch module; weights pre-transposed)."""
    ks = jax.random.split(key, 16)
    u = lambda k, s, a=0.5: jax.random.uniform(k, s, jnp.float32, -a, a)
    return {
        # GCNConv weights of TGCN gates: torch weight [in=1, out=4], bias [4] -> [1, 4]
        "w_gcn_z": u(ks[0], (1, C_OUT)), "b_gcn_z": u(ks[1], (1, C_OUT)),
        "w_gcn_r": u(ks[2], (1, C_OUT)), "b_gcn_r": u(ks[3], (1, C_OUT)),
        "w_gcn_h": u(ks[4], (1, C_OUT)), "b_gcn_h": u(ks[5], (1, C_OUT)),
        # TGCN gate linears: torch Linear(8, 4) weight [4, 8] -> transposed [8, 4]
        "w_lin_z": u(ks[6], (2 * C_OUT, C_OUT)), "b_lin_z": u(ks[7], (1, C_OUT)),
        "w_lin_r": u(ks[8], (2 * C_OUT, C_OUT)), "b_lin_r": u(ks[9], (1, C_OUT)),
        "w_lin_h": u(ks[10], (2 * C_OUT, C_OUT)), "b_lin_h": u(ks[11], (1, C_OUT)),
        # A3TGCN temporal attention: [periods] -> [1, periods]
        "attention": u(ks[12], (1, periods)),
        # Final torch Linear(4, 12): weight [12, 4] -> transposed [4, 12], bias [12] -> [1, 12]
        "w_linear": u(ks[13], (C_OUT, LIN_OUT)), "b_linear": u(ks[14], (1, LIN_OUT)),
    }


# ----------------------------------------------------------------------------- main
if __name__ == "__main__":
    P_PERIODS = 4   # sys.argv[1] "p" in the original script
    F_OUT = 8       # sys.argv[2] "f" in the original script (slice of the 12 linear outputs)
    N_NODES = 16

    key = jax.random.PRNGKey(0)
    k_x, k_p = jax.random.split(key)

    # data.x: [num_nodes, in_channels=1, periods]
    x = jax.random.normal(k_x, (N_NODES, 1, P_PERIODS), jnp.float32)
    # bidirectional ring graph: [2, 2*N] edge_index
    idx = np.arange(N_NODES)
    edge_index = jnp.asarray(
        np.stack([np.concatenate([idx, (idx + 1) % N_NODES]),
                  np.concatenate([(idx + 1) % N_NODES, idx])], axis=0),
        dtype=jnp.int32)

    params = init_params(k_p, P_PERIODS)

    # Adjacency normalization hoisted out of the per-call path (built once, reused).
    a_hat = gcn_norm_adj(edge_index, N_NODES)
    a_hat = jax.block_until_ready(a_hat)

    ref = reference_forward(x, edge_index, params, F_OUT)

    # Default path: bf16 A_hat / X_rep stream with f32 accumulation (dominant stage halves HBM
    # traffic); looser tolerance covers the bf16 rounding of D^-1/2.
    out = jax.block_until_ready(net_forward(x, a_hat, params, F_OUT))
    assert out.shape == (N_NODES, F_OUT)
    np.testing.assert_allclose(np.asarray(out), np.asarray(ref), atol=2e-2, rtol=2e-2)

    # f32 path: algebraic folding is exact, so this matches the full-form reference tightly.
    out_f32 = jax.block_until_ready(
        net_forward(x, a_hat, params, F_OUT, matmul_dtype=jnp.float32))
    np.testing.assert_allclose(np.asarray(out_f32), np.asarray(ref), atol=5e-3, rtol=5e-3)

    print("KERNEL_OK")
</pallas_src>

<mosaic_0001>
module attributes {stable_mosaic.version = 11 : i64} {
  func.func @_net_kernel(%arg0: i32, %arg1: i32, %arg2: memref<8x16xbf16, #tpu.memory_space<vmem>>, %arg3: memref<16x16xbf16, #tpu.memory_space<vmem>>, %arg4: memref<4x16xf32, #tpu.memory_space<vmem>>, %arg5: memref<17x8xf32, #tpu.memory_space<vmem>>, %arg6: memref<8x8xf32, #tpu.memory_space<vmem>>, %arg7: memref<8x16xf32, #tpu.memory_space<vmem>>) attributes {dimension_semantics = [#tpu.dimension_semantics<parallel>, #tpu.dimension_semantics<arbitrary>], iteration_bounds = array<i64: 2, 1>, scalar_prefetch = 0 : i64, scratch_operands = 1 : i64, tpu.core_type = #tpu.core_type<tc>, window_params = [{transform_indices = @transform_0, window_bounds = array<i64: 8, 16>}, {transform_indices = @transform_1, window_bounds = array<i64: 16, 16>}, {pipeline_mode = #tpu.pipeline_mode<synchronous>, transform_indices = @transform_2, window_bounds = array<i64: 4, 16>}, {pipeline_mode = #tpu.pipeline_mode<synchronous>, transform_indices = @transform_3, window_bounds = array<i64: 17, 8>}, {transform_indices = @transform_4, window_bounds = array<i64: 8, 8>}]} {
    %c0_i32 = arith.constant 0 : i32
    %0 = arith.cmpi eq, %arg1, %c0_i32 : i32
    %1 = arith.extui %0 : i1 to i32
    %c0_i32_0 = arith.constant 0 : i32
    %2 = arith.cmpi ne, %1, %c0_i32_0 : i32
    scf.if %2 {
      %cst_10 = arith.constant 0.000000e+00 : f32
      %12 = vector.broadcast %cst_10 : f32 to vector<8x16xf32>
      %c0_11 = arith.constant 0 : index
      %c0_12 = arith.constant 0 : index
      %13 = vector.load %arg7[%c0_11, %c0_12] : memref<8x16xf32, #tpu.memory_space<vmem>>, vector<8x16xf32>
      tpu.vector_store %arg7[%c0_11, %c0_12], %12 {strides = array<i32>} : memref<8x16xf32, #tpu.memory_space<vmem>>, vector<8x16xf32>,
    } else {
    }
    %c0 = arith.constant 0 : index
    %c0_1 = arith.constant 0 : index
    %3 = vector.load %arg7[%c0, %c0_1] : memref<8x16xf32, #tpu.memory_space<vmem>>, vector<8x16xf32>
    %c0_2 = arith.constant 0 : index
    %c0_3 = arith.constant 0 : index
    %4 = vector.load %arg2[%c0_2, %c0_3] : memref<8x16xbf16, #tpu.memory_space<vmem>>, vector<8x16xbf16>
    %c0_4 = arith.constant 0 : index
    %c0_5 = arith.constant 0 : index
    %5 = vector.load %arg3[%c0_4, %c0_5] : memref<16x16xbf16, #tpu.memory_space<vmem>>, vector<16x16xbf16>
    %cst = arith.constant dense<0.000000e+00> : vector<8x16xf32>
    %6 = tpu.matmul %4, %5, %cst {dimension_numbers = #tpu.dot_dimension_numbers<[1], [0], [0], [1], [0, 0, 1, 1], [], []>} : vector<8x16xbf16>, vector<16x16xbf16>, vector<8x16xf32> -> vector<8x16xf32>
    %7 = arith.addf %3, %6 : vector<8x16xf32>
    %c0_6 = arith.constant 0 : index
    %c0_7 = arith.constant 0 : index
    %8 = vector.load %arg7[%c0_6, %c0_7] : memref<8x16xf32, #tpu.memory_space<vmem>>, vector<8x16xf32>
    tpu.vector_store %arg7[%c0_6, %c0_7], %7 {strides = array<i32>} : memref<8x16xf32, #tpu.memory_space<vmem>>, vector<8x16xf32>,
    %c0_i32_8 = arith.constant 0 : i32
    %9 = arith.cmpi eq, %arg1, %c0_i32_8 : i32
    %10 = arith.extui %9 : i1 to i32
    %c0_i32_9 = arith.constant 0 : i32
    %11 = arith.cmpi ne, %10, %c0_i32_9 : i32
    scf.if %11 {
      %c0_10 = arith.constant 0 : index
      %c0_11 = arith.constant 0 : index
      %12 = vector.load %arg7[%c0_10, %c0_11] : memref<8x16xf32, #tpu.memory_space<vmem>>, vector<8x16xf32>
      %c0_12 = arith.constant 0 : index
      %c0_13 = arith.constant 0 : index
      %13 = vector.load %arg4[%c0_12, %c0_13] : memref<4x16xf32, #tpu.memory_space<vmem>>, vector<1x16xf32>
      %c1 = arith.constant 1 : index
      %c0_14 = arith.constant 0 : index
      %14 = vector.load %arg4[%c1, %c0_14] : memref<4x16xf32, #tpu.memory_space<vmem>>, vector<1x16xf32>
      %c2 = arith.constant 2 : index
      %c0_15 = arith.constant 0 : index
      %15 = vector.load %arg4[%c2, %c0_15] : memref<4x16xf32, #tpu.memory_space<vmem>>, vector<1x16xf32>
      %c3 = arith.constant 3 : index
      %c0_16 = arith.constant 0 : index
      %16 = vector.load %arg4[%c3, %c0_16] : memref<4x16xf32, #tpu.memory_space<vmem>>, vector<1x16xf32>
      %17 = vector.broadcast %13 : vector<1x16xf32> to vector<8x16xf32>
      %18 = arith.mulf %12, %17 : vector<8x16xf32>
      %19 = vector.broadcast %14 : vector<1x16xf32> to vector<8x16xf32>
      %20 = arith.addf %18, %19 : vector<8x16xf32>
      %21 = arith.negf %20 : vector<8x16xf32>
      %22 = math.exp %21 : vector<8x16xf32>
      %cst_17 = arith.constant 1.000000e+00 : f32
      %23 = vector.broadcast %cst_17 : f32 to vector<8x16xf32>
      %24 = arith.addf %23, %22 : vector<8x16xf32>
      %25 = arith.divf %23, %24 : vector<8x16xf32>
      %26 = vector.broadcast %15 : vector<1x16xf32> to vector<8x16xf32>
      %27 = arith.mulf %12, %26 : vector<8x16xf32>
      %28 = vector.broadcast %16 : vector<1x16xf32> to vector<8x16xf32>
      %29 = arith.addf %27, %28 : vector<8x16xf32>
      %30 = math.tanh %29 : vector<8x16xf32>
      %cst_18 = arith.constant 1.000000e+00 : f32
      %31 = vector.broadcast %cst_18 : f32 to vector<8x16xf32>
      %32 = arith.subf %31, %25 : vector<8x16xf32>
      %33 = arith.mulf %32, %30 : vector<8x16xf32>
      %c0_19 = arith.constant 0 : index
      %c0_20 = arith.constant 0 : index
      %34 = vector.load %arg5[%c0_19, %c0_20] : memref<17x8xf32, #tpu.memory_space<vmem>>, vector<16x8xf32>
      %cst_21 = arith.constant dense<0.000000e+00> : vector<8x8xf32>
      %35 = tpu.matmul %33, %34, %cst_21 {dimension_numbers = #tpu.dot_dimension_numbers<[1], [0], [0], [1], [0, 0, 1, 1], [], []>} : vector<8x16xf32>, vector<16x8xf32>, vector<8x8xf32> -> vector<8x8xf32>
      %c16 = arith.constant 16 : index
      %c0_22 = arith.constant 0 : index
      %36 = vector.load %arg5[%c16, %c0_22] : memref<17x8xf32, #tpu.memory_space<vmem>>, vector<1x8xf32>
      %37 = vector.broadcast %36 : vector<1x8xf32> to vector<8x8xf32>
      %38 = arith.addf %35, %37 : vector<8x8xf32>
      %c0_23 = arith.constant 0 : index
      %c0_24 = arith.constant 0 : index
      %39 = vector.load %arg6[%c0_23, %c0_24] : memref<8x8xf32, #tpu.memory_space<vmem>>, vector<8x8xf32>
      tpu.vector_store %arg6[%c0_23, %c0_24], %38 {strides = array<i32>} : memref<8x8xf32, #tpu.memory_space<vmem>>, vector<8x8xf32>,
    } else {
    }
    return
  }
  func.func @transform_0(%arg0: i32, %arg1: i32) -> (i32, i32) {
    %c0_i32 = arith.constant 0 : i32
    return %arg0, %arg1 : i32, i32
  }
  func.func @transform_1(%arg0: i32, %arg1: i32) -> (i32, i32) {
    %c0_i32 = arith.constant 0 : i32
    %c0_i32_0 = arith.constant 0 : i32
    return %arg1, %c0_i32 : i32, i32
  }
  func.func @transform_2(%arg0: i32, %arg1: i32) -> (i32, i32) {
    %c0_i32 = arith.constant 0 : i32
    %c0_i32_0 = arith.constant 0 : i32
    %c0_i32_1 = arith.constant 0 : i32
    return %c0_i32, %c0_i32_0 : i32, i32
  }
  func.func @transform_3(%arg0: i32, %arg1: i32) -> (i32, i32) {
    %c0_i32 = arith.constant 0 : i32
    %c0_i32_0 = arith.constant 0 : i32
    %c0_i32_1 = arith.constant 0 : i32
    return %c0_i32, %c0_i32_0 : i32, i32
  }
  func.func @transform_4(%arg0: i32, %arg1: i32) -> (i32, i32) {
    %c0_i32 = arith.constant 0 : i32
    %c0_i32_0 = arith.constant 0 : i32
    return %arg0, %c0_i32 : i32, i32
  }
}

</mosaic_0001>

<llo_original>
// kernel: tpu_custom_call.1
$region0: #{tpu_custom_call.1}
  #allocation0 [shape = 'u32[]', space=smem, size = 0x4, offset = 0x4, fixed_abs, tag = 'smem constant byte address 0x4 - core index']
  #allocation1 [shape = 'u32[144,128]{1,0:T(1,128)}', space=vmem, size = 0x12000, scoped, tag = 'internal scratch']
  #allocation2 [shape = 'f32[8,16]{1,0:T(8,128)}', space=vmem, size = 0x1000, scoped, tag = 'scratch operand']
  %s0 = inlined_call_operand.vmem [shape: bf16[16,16], index: 0, kind: input, shape index: {}]
  %s1 = inlined_call_operand.vmem [shape: bf16[16,16], index: 1, kind: input, shape index: {}]
  %s2 = inlined_call_operand.vmem [shape: f32[4,16], index: 2, kind: input, shape index: {}]
  %s3 = inlined_call_operand.vmem [shape: f32[17,8], index: 3, kind: input, shape index: {}]
  %s4 = inlined_call_operand.vmem [shape: f32[16,8], index: 4, kind: output, shape index: {}]
  %s5 = sld [smem:[#allocation0]]
  $region57: #{tpu_custom_call.1} parent=0
    _
  %s7 = ssub.s32 1, %s5
  %s8 = scalar_select 0, %s7, %s5
  loop: start=0, step=1, limit=4
  $region2: #{tpu_custom_call.1} parent=0 // loop_pre_header
    _
  $region3: #{tpu_custom_call.1} parent=0 // loop_header
    %s10 = sphi 0, %s14
    %p11 = scmp.ge.s32.totalorder %s10, 4
    %s17 = sphi 0, %s29
    %s18 = sphi 0, %s25
    %s19 = sphi 0, %s17
    %s20 = sphi 0, %s18
    %s21 = sphi 0, %s19
    %s22 = sphi 0, %s20
    %s34 = sphi 0, %s36
    %s37 = sphi 0, %s34
    %s38 = sphi 0, %s37
    %s54 = sphi 0, %s38
    %s60 = sphi 0, %s62
    %s63 = sphi 0, %s60
    %s64 = sphi 0, %s63
    %s80 = sphi 0, %s64
    %s84 = sphi 0, %s84
    %s86 = sphi 0, %s84
    %s87 = sphi 0, %s86
    %s101 = sphi 0, %s87
    %s105 = sphi 0, %s105
    %s107 = sphi 0, %s105
    %s108 = sphi 0, %s107
    %s122 = sphi 0, %s108
    %s128 = sphi 0, %s130
    %s131 = sphi 0, %s128
    %s132 = sphi 0, %s131
    %s148 = sphi 0, %s132
  $region4: #{tpu_custom_call.1} parent=0 // loop_header_branch
    %13 = sbr.rel (%p11) target = $region8
  $region5: #{tpu_custom_call.1} parent=0 // loop_body
    %s15 = ssub.s32 %s10, 1
    %s16 = ssub.s32 %s10, 2
    %s23 = sadd.s32 1, %s18
    %p24 = scmp.ge.s32.totalorder %s23, 1
    %s25 = scalar_select %p24, 0, %s23
    %s26 = sadd.s32 1, %s17
    %s27 = scalar_select %p24, %s26, %s17
    %p28 = scmp.ge.s32.totalorder %s27, 2
    %s29 = scalar_select %p28, 0, %s27
    %s30 = ssub.s32 %s17, %s29
    %s31 = ssub.s32 %s18, %s25
    %s32 = sor.u32 %s30, %s31
    %p33 = scmp.eq.s32.totalorder %s32, 0
    %s35 = sadd.s32 %s34, 1
    %s36 = scalar_select %p33, %s34, %s35
    %p39 = pneg %p33
    %p40 = scmp.eq.s32.totalorder %s10, 1
    %p41 = por %p39, %p40
    %p42 = scmp.ne.s32.totalorder %s34, %s37
    %p43 = scmp.eq.s32.totalorder %s10, 0
    %p44 = por %p42, %p43
    %p45 = scmp.ne.s32.totalorder %s34, %s37
    %p46 = scmp.eq.s32.totalorder %s15, 1
    %p47 = por %p45, %p46
    %p48 = scmp.ne.s32.totalorder %s37, %s38
    %p49 = scmp.eq.s32.totalorder %s15, 0
    %p50 = por %p48, %p49
    %p51 = scmp.ne.s32.totalorder %s37, %s38
    %p52 = scmp.eq.s32.totalorder %s16, 1
    %p53 = por %p51, %p52
    %p55 = scmp.ne.s32.totalorder %s38, %s54
    %p56 = scmp.eq.s32.totalorder %s16, 0
    %p57 = por %p55, %p56
    %s58 = ssub.s32 %s18, %s25
    %p59 = scmp.eq.s32.totalorder %s58, 0
    %s61 = sadd.s32 %s60, 1
    %s62 = scalar_select %p59, %s60, %s61
    %p65 = pneg %p59
    %p66 = scmp.eq.s32.totalorder %s10, 1
    %p67 = por %p65, %p66
    %p68 = scmp.ne.s32.totalorder %s60, %s63
    %p69 = scmp.eq.s32.totalorder %s10, 0
    %p70 = por %p68, %p69
    %p71 = scmp.ne.s32.totalorder %s60, %s63
    %p72 = scmp.eq.s32.totalorder %s15, 1
    %p73 = por %p71, %p72
    %p74 = scmp.ne.s32.totalorder %s63, %s64
    %p75 = scmp.eq.s32.totalorder %s15, 0
    %p76 = por %p74, %p75
    %p77 = scmp.ne.s32.totalorder %s63, %s64
    %p78 = scmp.eq.s32.totalorder %s16, 1
    %p79 = por %p77, %p78
    %p81 = scmp.ne.s32.totalorder %s64, %s80
    %p82 = scmp.eq.s32.totalorder %s16, 0
    %p83 = por %p81, %p82
    %s85 = sadd.s32 %s84, 1
    %p88 = scmp.eq.s32.totalorder %s10, 1
    %p89 = scmp.ne.s32.totalorder %s84, %s86
    %p90 = scmp.eq.s32.totalorder %s10, 0
    %p91 = por %p89, %p90
    %p92 = scmp.ne.s32.totalorder %s84, %s86
    %p93 = scmp.eq.s32.totalorder %s15, 1
    %p94 = por %p92, %p93
    %p95 = scmp.ne.s32.totalorder %s86, %s87
    %p96 = scmp.eq.s32.totalorder %s15, 0
    %p97 = por %p95, %p96
    %p98 = scmp.ne.s32.totalorder %s86, %s87
    %p99 = scmp.eq.s32.totalorder %s16, 1
    %p100 = por %p98, %p99
    %p102 = scmp.ne.s32.totalorder %s87, %s101
    %p103 = scmp.eq.s32.totalorder %s16, 0
    %p104 = por %p102, %p103
    %s106 = sadd.s32 %s105, 1
    %p109 = scmp.eq.s32.totalorder %s10, 1
    %p110 = scmp.ne.s32.totalorder %s105, %s107
    %p111 = scmp.eq.s32.totalorder %s10, 0
    %p112 = por %p110, %p111
    %p113 = scmp.ne.s32.totalorder %s105, %s107
    %p114 = scmp.eq.s32.totalorder %s15, 1
    %p115 = por %p113, %p114
    %p116 = scmp.ne.s32.totalorder %s107, %s108
    %p117 = scmp.eq.s32.totalorder %s15, 0
    %p118 = por %p116, %p117
    %p119 = scmp.ne.s32.totalorder %s107, %s108
    %p120 = scmp.eq.s32.totalorder %s16, 1
    %p121 = por %p119, %p120
    %p123 = scmp.ne.s32.totalorder %s108, %s122
    %p124 = scmp.eq.s32.totalorder %s16, 0
    %p125 = por %p123, %p124
    %s126 = ssub.s32 %s17, %s29
    %p127 = scmp.eq.s32.totalorder %s126, 0
    %s129 = sadd.s32 %s128, 1
    %s130 = scalar_select %p127, %s128, %s129
    %p133 = pneg %p127
    %p134 = scmp.eq.s32.totalorder %s10, 1
    %p135 = por %p133, %p134
    %p136 = scmp.ne.s32.totalorder %s128, %s131
    %p137 = scmp.eq.s32.totalorder %s10, 0
    %p138 = por %p136, %p137
    %p139 = scmp.ne.s32.totalorder %s128, %s131
    %p140 = scmp.eq.s32.totalorder %s15, 1
    %p141 = por %p139, %p140
    %p142 = scmp.ne.s32.totalorder %s131, %s132
    %p143 = scmp.eq.s32.totalorder %s15, 0
    %p144 = por %p142, %p143
    %p145 = scmp.ne.s32.totalorder %s131, %s132
    %p146 = scmp.eq.s32.totalorder %s16, 1
    %p147 = por %p145, %p146
    %p149 = scmp.ne.s32.totalorder %s132, %s148
    %p150 = scmp.eq.s32.totalorder %s16, 0
    %p151 = por %p149, %p150
    %p152 = scmp.le.s32.totalorder 1, %s10
    %p153 = scmp.lt.s32.totalorder %s10, 3
    %p154 = pnand %p152, %p153
    %p155 = pneg %p154
    // Predicated region
    $region9: #{tpu_custom_call.1} parent=5 // pred_check
      _
    $region10: #{tpu_custom_call.1} parent=5 // pred_check_branch
      %157 = sbr.rel (%p154) target = $region12
    $region11: #{tpu_custom_call.1} parent=5 // pred_region
      %s158 = ssub.s32 %s10, 1
      // Predicated region
      $region13: #{tpu_custom_call.1} parent=11 // pred_check
        %p159 = pneg %p76
      $region14: #{tpu_custom_call.1} parent=11 // pred_check_branch
        %161 = sbr.rel (%p159) target = $region16
      $region15: #{tpu_custom_call.1} parent=11 // pred_region
        %s162 = smul.u32 2, %s20
        %p163 = scmp.lt.s32.totalorder %s162, 1
        %s164 = scalar_select %p163, %s162, 1
        %s165 = smul.addr %s164, 4
        %s166 = scalar_lea.vmem %s1, %s165
        %s167 = smul.u32 2, %s20
      $region16: #{tpu_custom_call.1} parent=11 // pred_fallthru
        _
      // Predicated region
      $region17: #{tpu_custom_call.1} parent=11 // pred_check
        %p168 = pneg %p97
      $region18: #{tpu_custom_call.1} parent=11 // pred_check_branch
        %170 = sbr.rel (%p168) target = $region20
      $region19: #{tpu_custom_call.1} parent=11 // pred_region
        _
      $region20: #{tpu_custom_call.1} parent=11 // pred_fallthru
        _
      // Predicated region
      $region21: #{tpu_custom_call.1} parent=11 // pred_check
        %p171 = pneg %p118
      $region22: #{tpu_custom_call.1} parent=11 // pred_check_branch
        %173 = sbr.rel (%p171) target = $region24
      $region23: #{tpu_custom_call.1} parent=11 // pred_region
        _
      $region24: #{tpu_custom_call.1} parent=11 // pred_fallthru
        _
    $region12: #{tpu_custom_call.1} parent=5 // pred_fallthru
      _
    %p174 = scmp.lt.s32.totalorder %s10, 2
    // Predicated region
    $region25: #{tpu_custom_call.1} parent=5 // pred_check
      %p175 = pneg %p174
    $region26: #{tpu_custom_call.1} parent=5 // pred_check_branch
      %177 = sbr.rel (%p175) target = $region28
    $region27: #{tpu_custom_call.1} parent=5 // pred_region
      // Predicated region
      $region29: #{tpu_custom_call.1} parent=27 // pred_check
        %p178 = pneg %p44
      $region30: #{tpu_custom_call.1} parent=27 // pred_check_branch
        %180 = sbr.rel (%p178) target = $region32
      $region31: #{tpu_custom_call.1} parent=27 // pred_region
        %p181 = scmp.lt.s32.totalorder %s17, 1
        %s182 = scalar_select %p181, %s17, 1
        %p183 = scmp.lt.s32.totalorder %s18, 0
        %s184 = scalar_select %p183, %s18, 0
        %s185 = sadd.s32 %s184, %s182
        %s186 = smul.addr %s185, 4
        %s187 = scalar_lea.vmem %s0, %s186
      $region32: #{tpu_custom_call.1} parent=27 // pred_fallthru
        _
    $region28: #{tpu_custom_call.1} parent=5 // pred_fallthru
      _
    %p188 = scmp.le.s32.totalorder 1, %s10
    %p189 = scmp.lt.s32.totalorder %s10, 3
    %p190 = pnand %p188, %p189
    %p191 = pneg %p190
    // Predicated region
    $region33: #{tpu_custom_call.1} parent=5 // pred_check
      _
    $region34: #{tpu_custom_call.1} parent=5 // pred_check_branch
      %193 = sbr.rel (%p190) target = $region36
    $region35: #{tpu_custom_call.1} parent=5 // pred_region
      %s194 = ssub.s32 %s10, 1
      %p195 = scmp.lt.s32.totalorder %s19, 1
      %s196 = scalar_select %p195, %s19, 1
      %p197 = scmp.lt.s32.totalorder %s20, 0
      %s198 = scalar_select %p197, %s20, 0
      %s199 = sadd.s32 %s198, %s196
      %s200 = smul.addr %s199, 4
      %s201 = scalar_lea.vmem %s0, %s200
      %p202 = pneg %p50
      %p203 = pneg %p47
      %s204 = smul.u32 2, %s20
      %p205 = scmp.lt.s32.totalorder %s204, 1
      %s206 = scalar_select %p205, %s204, 1
      %s207 = smul.addr %s206, 4
      %s208 = scalar_lea.vmem %s1, %s207
      %p209 = pneg %p76
      %p210 = pneg %p73
      %p211 = pneg %p97
      %p212 = pneg %p94
      %p213 = pneg %p118
      %p214 = pneg %p115
      %p215 = pneg %p144
      %p216 = pneg %p141
      %p217 = scmp.lt.s32.totalorder %s19, 1
      %s218 = scalar_select %p217, %s19, 1
      %s219 = smul.addr %s218, 8
      %s220 = scalar_lea.vmem %s4, %s219
      %p221 = scmp.lt.s32.totalorder %s19, 1
      %s222 = scalar_select %p221, %s19, 1
      %p223 = scmp.lt.s32.totalorder %s20, 0
      %s224 = scalar_select %p223, %s20, 0
      %s225 = sadd.s32 %s224, %s222
      %s226 = smul.addr %s225, 4
      %s227 = scalar_lea.vmem %s0, %s226
      %s228 = smul.u32 2, %s20
      %p229 = scmp.lt.s32.totalorder %s228, 1
      %s230 = scalar_select %p229, %s228, 1
      %s231 = smul.addr %s230, 4
      %s232 = scalar_lea.vmem %s1, %s231
      %s233 = smul.u32 2, %s20
      %p234 = scmp.lt.s32.totalorder %s19, 1
      %s235 = scalar_select %p234, %s19, 1
      %s236 = smul.addr %s235, 8
      %s237 = scalar_lea.vmem %s4, %s236
      %p239 = scmp.eq.s32.totalorder %s20, 0
      // Predicated region
      $region37: #{tpu_custom_call.1} parent=35 // pred_check
        %p240 = pneg %p239
      $region38: #{tpu_custom_call.1} parent=35 // pred_check_branch
        %242 = sbr.rel (%p240) target = $region40
      $region39: #{tpu_custom_call.1} parent=35 // pred_region
        %vm243 = vcmask 130048
        %244 = vst.msk [vmem:[#allocation2] sm:$0xff] %vm243, 0.0
      $region40: #{tpu_custom_call.1} parent=35 // pred_fallthru
        _
      %v245 = vld [vmem:[#allocation2] sm:$0xff]
      %v246 = vld [vmem:[%s227] sm:$0xf]
      %v247 = vld [vmem:[%s232] sm:$0xf]
      %v248 = vld [vmem:[%s232 + $0x4] sm:$0xf]
      %v251 = vunpack.c.l.b16 %v247
      %v252 = vunpack.c.l.b16 %v248
      %v253 = vpack.c.b16 %v252, %v251
      %vm255 = vcmask 130048
      %v257 = vsel %vm255, %v246, 0
      %259 = vmatprep.subr.bf16.mxu0 0
      %260 = vmatpush1.bf16.msra.mxu0 %v253
      %261 = vmatprep.subr.bf16.mxu0 0
      %262 = vmatpush1.bf16.msra.mxu0 0
      %263 = vmatprep.subr.bf16.mxu0 0
      %264 = vmatpush1.bf16.msra.mxu0 0
      %265 = vmatprep.subr.bf16.mxu0 0
      %266 = vmatpush1.bf16.msra.mxu0 0
      %267 = vmatprep.subr.bf16.mxu0 0
      %268 = vmatpush1.bf16.msra.mxu0 0
      %269 = vmatprep.subr.bf16.mxu0 0
      %270 = vmatpush1.bf16.msra.mxu0 0
      %271 = vmatprep.subr.bf16.mxu0 0
      %272 = vmatpush1.bf16.msra.mxu0 0
      %273 = vmatprep.subr.bf16.mxu0 0
      %274 = vmatpush1.bf16.msra.mxu0 0
      %275 = vmatprep.subr.bf16.mxu0 0
      %276 = vmatpush1.bf16.msra.mxu0 0
      %277 = vmatprep.subr.bf16.mxu0 0
      %278 = vmatpush1.bf16.msra.mxu0 0
      %279 = vmatprep.subr.bf16.mxu0 0
      %280 = vmatpush1.bf16.msra.mxu0 0
      %281 = vmatprep.subr.bf16.mxu0 0
      %282 = vmatpush1.bf16.msra.mxu0 0
      %283 = vmatprep.subr.bf16.mxu0 0
      %284 = vmatpush1.bf16.msra.mxu0 0
      %285 = vmatprep.subr.bf16.mxu0 0
      %286 = vmatpush1.bf16.msra.mxu0 0
      %287 = vmatprep.subr.bf16.mxu0 0
      %288 = vmatpush1.bf16.msra.mxu0 0
      %289 = vmatprep.subr.bf16.mxu0 0
      %290 = vmatpush1.bf16.msra.mxu0 0
      %291 = vmatprep.mubr.bf16.mxu0 0
      %292 = vmatmul.mubr.bf16.gmra.mrb[0].mxu0 %v257
      %v293 = vpop.f32.mrb[0].mxu0
      %v294 = vadd.f32 0.0, %v293
      %v295 = vpop.f32.mrb[0].mxu0
      %v296 = vpop.f32.mrb[0].mxu0
      %v297 = vpop.f32.mrb[0].mxu0
      %298 = vdwg.mxu0
      %v299 = vadd.f32 %v245, %v294
      %300 = vst.msk [vmem:[#allocation2] sm:$0xff] %vm255, %v299
      // Predicated region
      $region41: #{tpu_custom_call.1} parent=35 // pred_check
        %p301 = pneg %p239
      $region42: #{tpu_custom_call.1} parent=35 // pred_check_branch
        %303 = sbr.rel (%p301) target = $region44
      $region43: #{tpu_custom_call.1} parent=35 // pred_region
        %v304 = vld [vmem:[#allocation2] sm:$0xff]
        %v305 = vld [vmem:[%s2] sm:$0x1]
        %v306 = vld [vmem:[%s2 + $0x1] sm:$0x1]
        %v307 = vld [vmem:[%s2 + $0x2] sm:$0x1]
        %v308 = vld [vmem:[%s2 + $0x3] sm:$0x1]
        %v309 = vlaneseq
        %v310 = vshrl.u32 %v309, 7
        %v311 = vsub.s32 0, %v310
        %v312 = vrot.slane %v305, %v311
        %v313 = vmul.f32 %v304, %v312
        %v314 = vlaneseq
        %v315 = vshrl.u32 %v314, 7
        %v316 = vsub.s32 0, %v315
        %v317 = vrot.slane %v306, %v316
        %v318 = vadd.f32 %v313, %v317
        %v319 = vxor.u32 %v318, 2147483648
        %v320 = vmul.f32 %v319, 1.442695
        %v321 = vpow.pop %v320
        %v322 = vadd.f32 %v321, 1.0
        %v323 = vrcp.pop %v322
        %v324 = vmul.f32 1.0, %v323
        %v325 = vlaneseq
        %v326 = vshrl.u32 %v325, 7
        %v327 = vsub.s32 0, %v326
        %v328 = vrot.slane %v307, %v327
        %v329 = vmul.f32 %v304, %v328
        %v330 = vlaneseq
        %v331 = vshrl.u32 %v330, 7
        %v332 = vsub.s32 0, %v331
        %v333 = vrot.slane %v308, %v332
        %v334 = vadd.f32 %v329, %v333
        %v335 = vtanh.pop %v334
        %v336 = vsub.f32 1.0, %v324
        %v337 = vmul.f32 %v336, %v335
        %v338 = vld [vmem:[%s3] sm:$0xff]
        %v339 = vld [vmem:[%s3 + $0x8] sm:$0xff]
        %v340 = vld [vmem:[%s3 + $0x10] sm:$0x1]
        %v341 = vlaneseq
        %v342 = vshrl.u32 %v341, 7
        %v343 = vsub.s32 0, %v342
        %v344 = vrot.slane %v340, %v343
        %v346 = vsel %vm255, %v337, 0
        %348 = vmatprep.subr.mxu0 0.0
        %349 = vmatpush1.msra.mxu0 %v338
        %350 = vmatprep.subr.mxu0 0.0
        %351 = vmatpush1.msra.mxu0 %v339
        %352 = vmatprep.subr.mxu0 0.0
        %353 = vmatpush1.msra.mxu0 0.0
        %354 = vmatprep.subr.mxu0 0.0
        %355 = vmatpush1.msra.mxu0 0.0
        %356 = vmatprep.subr.mxu0 0.0
        %357 = vmatpush1.msra.mxu0 0.0
        %358 = vmatprep.subr.mxu0 0.0
        %359 = vmatpush1.msra.mxu0 0.0
        %360 = vmatprep.subr.mxu0 0.0
        %361 = vmatpush1.msra.mxu0 0.0
        %362 = vmatprep.subr.mxu0 0.0
        %363 = vmatpush1.msra.mxu0 0.0
        %364 = vmatprep.subr.mxu0 0.0
        %365 = vmatpush1.msra.mxu0 0.0
        %366 = vmatprep.subr.mxu0 0.0
        %367 = vmatpush1.msra.mxu0 0.0
        %368 = vmatprep.subr.mxu0 0.0
        %369 = vmatpush1.msra.mxu0 0.0
        %370 = vmatprep.subr.mxu0 0.0
        %371 = vmatpush1.msra.mxu0 0.0
        %372 = vmatprep.subr.mxu0 0.0
        %373 = vmatpush1.msra.mxu0 0.0
        %374 = vmatprep.subr.mxu0 0.0
        %375 = vmatpush1.msra.mxu0 0.0
        %376 = vmatprep.subr.mxu0 0.0
        %377 = vmatpush1.msra.mxu0 0.0
        %378 = vmatprep.subr.mxu0 0.0
        %379 = vmatpush1.msra.mxu0 0.0
        %380 = vmatprep.subr.mxu0 0.0
        %381 = vmatpush1.msra.mxu0 0.0
        %382 = vmatprep.subr.mxu0 0.0
        %383 = vmatpush1.msra.mxu0 0.0
        %384 = vmatprep.subr.mxu0 0.0
        %385 = vmatpush1.msra.mxu0 0.0
        %386 = vmatprep.subr.mxu0 0.0
        %387 = vmatpush1.msra.mxu0 0.0
        %388 = vmatprep.subr.mxu0 0.0
        %389 = vmatpush1.msra.mxu0 0.0
        %390 = vmatprep.subr.mxu0 0.0
        %391 = vmatpush1.msra.mxu0 0.0
        %392 = vmatprep.subr.mxu0 0.0
        %393 = vmatpush1.msra.mxu0 0.0
        %394 = vmatprep.subr.mxu0 0.0
        %395 = vmatpush1.msra.mxu0 0.0
        %396 = vmatprep.subr.mxu0 0.0
        %397 = vmatpush1.msra.mxu0 0.0
        %398 = vmatprep.subr.mxu0 0.0
        %399 = vmatpush1.msra.mxu0 0.0
        %400 = vmatprep.subr.mxu0 0.0
        %401 = vmatpush1.msra.mxu0 0.0
        %402 = vmatprep.subr.mxu0 0.0
        %403 = vmatpush1.msra.mxu0 0.0
        %404 = vmatprep.subr.mxu0 0.0
        %405 = vmatpush1.msra.mxu0 0.0
        %406 = vmatprep.subr.mxu0 0.0
        %407 = vmatpush1.msra.mxu0 0.0
        %408 = vmatprep.subr.mxu0 0.0
        %409 = vmatpush1.msra.mxu0 0.0
        %410 = vmatprep.subr.mxu0 0.0
        %411 = vmatpush1.msra.mxu0 0.0
        %412 = vmatprep.mubr.f32.mxu0 0.0
        %413 = vmatmul.mubr.f32.gmra.mrb[0].mxu0 %v346
        %v414 = vpop.f32.mrb[0].mxu0
        %v415 = vadd.f32 %v344, %v414
        %v416 = vpop.f32.mrb[0].mxu0
        %417 = vdwg.mxu0
        %vm418 = vcmask 64512
        %419 = vst.msk [vmem:[%s237] sm:$0xff] %vm418, %v415
      $region44: #{tpu_custom_call.1} parent=35 // pred_fallthru
        _
      %p420 = scmp.lt.s32.totalorder %s19, 1
      %s421 = scalar_select %p420, %s19, 1
      %s422 = smul.addr %s421, 8
      %s423 = scalar_lea.vmem %s4, %s422
      // Predicated region
      $region45: #{tpu_custom_call.1} parent=35 // pred_check
        %p424 = pneg %p141
      $region46: #{tpu_custom_call.1} parent=35 // pred_check_branch
        %426 = sbr.rel (%p424) target = $region48
      $region47: #{tpu_custom_call.1} parent=35 // pred_region
        _
      $region48: #{tpu_custom_call.1} parent=35 // pred_fallthru
        _
    $region36: #{tpu_custom_call.1} parent=5 // pred_fallthru
      _
    %p427 = scmp.le.s32.totalorder 2, %s10
    // Predicated region
    $region49: #{tpu_custom_call.1} parent=5 // pred_check
      %p428 = pneg %p427
    $region50: #{tpu_custom_call.1} parent=5 // pred_check_branch
      %430 = sbr.rel (%p428) target = $region52
    $region51: #{tpu_custom_call.1} parent=5 // pred_region
      %s431 = ssub.s32 %s10, 2
      // Predicated region
      $region53: #{tpu_custom_call.1} parent=51 // pred_check
        %p432 = pneg %p147
      $region54: #{tpu_custom_call.1} parent=51 // pred_check_branch
        %434 = sbr.rel (%p432) target = $region56
      $region55: #{tpu_custom_call.1} parent=51 // pred_region
        %p435 = scmp.lt.s32.totalorder %s21, 1
        %s436 = scalar_select %p435, %s21, 1
        %s437 = smul.addr %s436, 8
        %s438 = scalar_lea.vmem %s4, %s437
      $region56: #{tpu_custom_call.1} parent=51 // pred_fallthru
        _
    $region52: #{tpu_custom_call.1} parent=5 // pred_fallthru
      _
  $region6: #{tpu_custom_call.1} parent=0 // loop_footer
    %s14 = sadd.s32 1, %s10
  $region7: #{tpu_custom_call.1} parent=0 // loop_footer_branch
    %9 = sbr.rel target = $region3
  $region8: #{tpu_custom_call.1} parent=0 // loop_exit
    _

</llo_original>
